<compile_context>
chip_gen: v5e
topology: v5e:2x2
jax: 0.10.0
libtpu: 0.0.40
codegen_flags: <defaults>
</compile_context>

<pallas_src>
import functools

import jax
import jax.numpy as jnp
from jax import lax
from jax.experimental import pallas as pl
from jax.experimental.pallas import tpu as pltpu

LN_EPS = 1e-5  # torch.nn.LayerNorm default


def _cdiv(a, b):
    return -(-a // b)


def _round_up(n, m):
    return _cdiv(n, m) * m


def _ln_relu(h, gamma, beta):
    """One-pass LayerNorm statistics (biased variance, matching PyTorch) + ReLU."""
    inv_n = 1.0 / h.shape[-1]
    s = jnp.sum(h, axis=-1, keepdims=True)
    s2 = jnp.sum(h * h, axis=-1, keepdims=True)
    mu = s * inv_n
    var = s2 * inv_n - mu * mu
    y = (h - mu) * lax.rsqrt(var + LN_EPS) * gamma + beta
    return jnp.maximum(y, 0.0)


def critic_kernel(x_ref, w1_ref, w2_ref, p_ref, o_ref):
    """p_ref rows: 0=b1 1=g1 2=be1 3=b2 4=g2 5=be2 6=w3_row 7=b3(broadcast)."""
    x = x_ref[...]  # (bb, in_dim) bf16

    # --- fc1 (bf16 MXU, f32 accumulate) + ln1 + relu -------------------------
    h = jnp.dot(x, w1_ref[...], preferred_element_type=jnp.float32)
    h = _ln_relu(h + p_ref[0:1, :], p_ref[1:2, :], p_ref[2:3, :])

    # --- fc2 (bf16 MXU, f32 accumulate) + ln2 + relu -------------------------
    h = jnp.dot(h.astype(jnp.bfloat16), w2_ref[...],
                preferred_element_type=jnp.float32)
    h = _ln_relu(h + p_ref[3:4, :], p_ref[4:5, :], p_ref[5:6, :])

    # --- fc3 (scalar value head): VPU multiply + XLU lane reduce.  Avoids an
    # M=1 MXU pass and any implicit transpose of the (bb, H) h tile. ----------
    v = jnp.sum(h * p_ref[6:7, :], axis=-1, keepdims=True) + p_ref[7:8, 0:1]
    o_ref[...] = v.astype(o_ref.dtype)


@functools.partial(jax.jit, static_argnames=("block_b",))
def critic_forward(x, params, *, block_b=1024):
    """x: (B, in_dim) float32 -> (B, 1) float32."""
    (w1, b1, g1, be1, w2, b2, g2, be2, w3, b3) = params
    B, in_dim = x.shape
    hidden = w1.shape[1]

    # --- grid / tile selection (divisor-based to minimize padding waste) -----
    grid_n = _cdiv(B, block_b)
    if B >= 256:
        grid_n = max(grid_n, 2)          # v7x: keep both TensorCores busy
    if grid_n > 1:
        bb = _round_up(_cdiv(B, grid_n), 128)   # (8,128)-aligned block
    else:
        bb = _round_up(B, 8)                    # single block, sublane-aligned
    Bp = grid_n * bb

    # Stream x as bf16 (halves the only per-step DMA); pad batch if needed.
    x_p = x.astype(jnp.bfloat16)
    if Bp != B:
        x_p = jnp.pad(x_p, ((0, Bp - B), (0, 0)))

    # Pack the nine tiny per-feature parameters into a single (8, hidden) f32
    # tile: one DMA / one VMEM tile instead of nine.  Accepts (1,H) or (H,).
    row = lambda a: jnp.asarray(a, jnp.float32).reshape(1, -1)
    p = jnp.concatenate(
        [
            row(b1), row(g1), row(be1),                        # rows 0..2
            row(b2), row(g2), row(be2),                        # rows 3..5
            jnp.asarray(w3, jnp.float32).reshape(1, hidden),   # row 6: fc3 w
            jnp.broadcast_to(jnp.asarray(b3, jnp.float32).reshape(1, 1),
                             (1, hidden)),                     # row 7: fc3 b
        ],
        axis=0,
    )

    w1b = w1.astype(jnp.bfloat16)
    w2b = w2.astype(jnp.bfloat16)

    full = lambda a: pl.BlockSpec(a.shape, lambda i: (0,) * a.ndim)

    cost = pl.CostEstimate(
        flops=2 * Bp * in_dim * hidden + 2 * Bp * hidden * hidden
              + 2 * Bp * hidden,
        transcendentals=2 * Bp,                      # one rsqrt per row per LN
        bytes_accessed=(x_p.size * 2 + w1b.size * 2 + w2b.size * 2
                        + p.size * 4 + Bp * 4),
    )

    out = pl.pallas_call(
        critic_kernel,
        out_shape=jax.ShapeDtypeStruct((Bp, 1), jnp.float32),
        grid_spec=pl.GridSpec(
            grid=(grid_n,),
            in_specs=[
                pl.BlockSpec((bb, in_dim), lambda i: (i, 0)),  # x (batch-tiled)
                full(w1b),                                     # fc1 weight
                full(w2b),                                     # fc2 weight
                full(p),                                       # packed params
            ],
            out_specs=pl.BlockSpec((bb, 1), lambda i: (i, 0)),
        ),
        compiler_params=pltpu.CompilerParams(
            dimension_semantics=("parallel",),
            vmem_limit_bytes=48 * 1024 * 1024,
        ),
        cost_estimate=cost,
    )(x_p, w1b, w2b, p)

    return out[:B]


def init_params(key, in_dim, hidden_dim):
    """Deterministic synthetic init mimicking nn.Linear / nn.LayerNorm."""
    ks = jax.random.split(key, 6)

    def linear(kw, kb, fan_in, fan_out):
        bound = 1.0 / jnp.sqrt(fan_in)
        w = jax.random.uniform(kw, (fan_in, fan_out), jnp.float32, -bound, bound)
        b = jax.random.uniform(kb, (1, fan_out), jnp.float32, -bound, bound)
        return w, b

    w1, b1 = linear(ks[0], ks[1], in_dim, hidden_dim)
    w2, b2 = linear(ks[2], ks[3], hidden_dim, hidden_dim)
    w3, b3 = linear(ks[4], ks[5], hidden_dim, 1)
    g1 = jnp.ones((1, hidden_dim), jnp.float32)
    be1 = jnp.zeros((1, hidden_dim), jnp.float32)
    g2 = jnp.ones((1, hidden_dim), jnp.float32)
    be2 = jnp.zeros((1, hidden_dim), jnp.float32)
    return (w1, b1, g1, be1, w2, b2, g2, be2, w3, b3)


def critic_ref(x, params, matmul_dtype=jnp.float32):
    """Pure-JAX reference of the PyTorch forward pass.

    With matmul_dtype=bf16 it mirrors the kernel's bf16-MXU / f32-accumulate
    numerics; with f32 it is the exact PyTorch-equivalent forward.
    """
    (w1, b1, g1, be1, w2, b2, g2, be2, w3, b3) = params

    def mm(a, w):
        return jnp.dot(a.astype(matmul_dtype), w.astype(matmul_dtype),
                       preferred_element_type=jnp.float32)

    def ln(h, g, be):
        mu = jnp.mean(h, axis=-1, keepdims=True)
        var = jnp.mean((h - mu) ** 2, axis=-1, keepdims=True)
        return (h - mu) / jnp.sqrt(var + LN_EPS) * g + be

    h = jax.nn.relu(ln(mm(x, w1) + b1, g1, be1))
    h = jax.nn.relu(ln(mm(h, w2) + b2, g2, be2))
    return h @ w3 + b3


if __name__ == "__main__":
    key = jax.random.PRNGKey(0)

    # Test 1: small demo shapes (single grid step).
    B, IN_DIM, HIDDEN = 16, 32, 32
    kx, kp, key = jax.random.split(key, 3)
    x = jax.random.normal(kx, (B, IN_DIM), jnp.float32)
    params = init_params(kp, IN_DIM, HIDDEN)

    out = jax.block_until_ready(critic_forward(x, params))
    assert out.shape == (B, 1), out.shape
    ref_mixed = critic_ref(x, params, matmul_dtype=jnp.bfloat16)
    ref_f32 = critic_ref(x, params, matmul_dtype=jnp.float32)
    assert jnp.allclose(out, ref_mixed, atol=2e-3, rtol=2e-3)
    assert jnp.allclose(out, ref_f32, atol=1.5e-1, rtol=1.5e-1)

    # Test 2: multi-step grid with batch padding (exercises v7x 2-step path).
    B2, IN_DIM2, HIDDEN2 = 300, 64, 256
    kx2, kp2 = jax.random.split(key)
    x2 = jax.random.normal(kx2, (B2, IN_DIM2), jnp.float32)
    params2 = init_params(kp2, IN_DIM2, HIDDEN2)

    out2 = jax.block_until_ready(critic_forward(x2, params2))
    assert out2.shape == (B2, 1), out2.shape
    ref2_mixed = critic_ref(x2, params2, matmul_dtype=jnp.bfloat16)
    ref2_f32 = critic_ref(x2, params2, matmul_dtype=jnp.float32)
    assert jnp.allclose(out2, ref2_mixed, atol=2e-3, rtol=2e-3)
    assert jnp.allclose(out2, ref2_f32, atol=1.5e-1, rtol=1.5e-1)

    print("KERNEL_OK")
</pallas_src>

<mosaic_0001>
module attributes {stable_mosaic.version = 11 : i64} {
  func.func @critic_kernel(%arg0: i32, %arg1: memref<16x32xbf16, #tpu.memory_space<vmem>>, %arg2: memref<32x32xbf16, #tpu.memory_space<vmem>>, %arg3: memref<32x32xbf16, #tpu.memory_space<vmem>>, %arg4: memref<8x32xf32, #tpu.memory_space<vmem>>, %arg5: memref<16x1xf32, #tpu.memory_space<vmem>>) attributes {dimension_semantics = [#tpu.dimension_semantics<parallel>], iteration_bounds = array<i64: 1>, scalar_prefetch = 0 : i64, scratch_operands = 0 : i64, tpu.core_type = #tpu.core_type<tc>, window_params = [{transform_indices = @transform_0, window_bounds = array<i64: 16, 32>}, {pipeline_mode = #tpu.pipeline_mode<synchronous>, transform_indices = @transform_1, window_bounds = array<i64: 32, 32>}, {pipeline_mode = #tpu.pipeline_mode<synchronous>, transform_indices = @transform_2, window_bounds = array<i64: 32, 32>}, {pipeline_mode = #tpu.pipeline_mode<synchronous>, transform_indices = @transform_3, window_bounds = array<i64: 8, 32>}, {transform_indices = @transform_4, window_bounds = array<i64: 16, 1>}]} {
    %c0 = arith.constant 0 : index
    %c0_0 = arith.constant 0 : index
    %0 = vector.load %arg1[%c0, %c0_0] : memref<16x32xbf16, #tpu.memory_space<vmem>>, vector<16x32xbf16>
    %c0_1 = arith.constant 0 : index
    %c0_2 = arith.constant 0 : index
    %1 = vector.load %arg2[%c0_1, %c0_2] : memref<32x32xbf16, #tpu.memory_space<vmem>>, vector<32x32xbf16>
    %cst = arith.constant dense<0.000000e+00> : vector<16x32xf32>
    %2 = tpu.matmul %0, %1, %cst {dimension_numbers = #tpu.dot_dimension_numbers<[1], [0], [0], [1], [0, 0, 1, 1], [], []>} : vector<16x32xbf16>, vector<32x32xbf16>, vector<16x32xf32> -> vector<16x32xf32>
    %c0_3 = arith.constant 0 : index
    %c0_4 = arith.constant 0 : index
    %3 = vector.load %arg4[%c0_3, %c0_4] : memref<8x32xf32, #tpu.memory_space<vmem>>, vector<1x32xf32>
    %4 = vector.broadcast %3 : vector<1x32xf32> to vector<16x32xf32>
    %5 = arith.addf %2, %4 : vector<16x32xf32>
    %c1 = arith.constant 1 : index
    %c0_5 = arith.constant 0 : index
    %6 = vector.load %arg4[%c1, %c0_5] : memref<8x32xf32, #tpu.memory_space<vmem>>, vector<1x32xf32>
    %c2 = arith.constant 2 : index
    %c0_6 = arith.constant 0 : index
    %7 = vector.load %arg4[%c2, %c0_6] : memref<8x32xf32, #tpu.memory_space<vmem>>, vector<1x32xf32>
    %cst_7 = arith.constant dense<0.000000e+00> : vector<16xf32>
    %8 = vector.multi_reduction <add>, %5, %cst_7 [1] : vector<16x32xf32> to vector<16xf32>
    %9 = vector.shape_cast %8 : vector<16xf32> to vector<16x1xf32>
    %10 = arith.mulf %5, %5 : vector<16x32xf32>
    %cst_8 = arith.constant dense<0.000000e+00> : vector<16xf32>
    %11 = vector.multi_reduction <add>, %10, %cst_8 [1] : vector<16x32xf32> to vector<16xf32>
    %12 = vector.shape_cast %11 : vector<16xf32> to vector<16x1xf32>
    %cst_9 = arith.constant 3.125000e-02 : f32
    %13 = vector.broadcast %cst_9 : f32 to vector<16x1xf32>
    %14 = arith.mulf %9, %13 : vector<16x1xf32>
    %cst_10 = arith.constant 3.125000e-02 : f32
    %15 = vector.broadcast %cst_10 : f32 to vector<16x1xf32>
    %16 = arith.mulf %12, %15 : vector<16x1xf32>
    %17 = arith.mulf %14, %14 : vector<16x1xf32>
    %18 = arith.subf %16, %17 : vector<16x1xf32>
    %19 = vector.broadcast %14 : vector<16x1xf32> to vector<16x32xf32>
    %20 = arith.subf %5, %19 : vector<16x32xf32>
    %cst_11 = arith.constant 9.99999974E-6 : f32
    %21 = vector.broadcast %cst_11 : f32 to vector<16x1xf32>
    %22 = arith.addf %18, %21 : vector<16x1xf32>
    %23 = math.rsqrt %22 : vector<16x1xf32>
    %24 = vector.broadcast %23 : vector<16x1xf32> to vector<16x32xf32>
    %25 = arith.mulf %20, %24 : vector<16x32xf32>
    %26 = vector.broadcast %6 : vector<1x32xf32> to vector<16x32xf32>
    %27 = arith.mulf %25, %26 : vector<16x32xf32>
    %28 = vector.broadcast %7 : vector<1x32xf32> to vector<16x32xf32>
    %29 = arith.addf %27, %28 : vector<16x32xf32>
    %cst_12 = arith.constant 0.000000e+00 : f32
    %30 = vector.broadcast %cst_12 : f32 to vector<16x32xf32>
    %31 = arith.maximumf %29, %30 : vector<16x32xf32>
    %32 = arith.truncf %31 : vector<16x32xf32> to vector<16x32xbf16>
    %c0_13 = arith.constant 0 : index
    %c0_14 = arith.constant 0 : index
    %33 = vector.load %arg3[%c0_13, %c0_14] : memref<32x32xbf16, #tpu.memory_space<vmem>>, vector<32x32xbf16>
    %cst_15 = arith.constant dense<0.000000e+00> : vector<16x32xf32>
    %34 = tpu.matmul %32, %33, %cst_15 {dimension_numbers = #tpu.dot_dimension_numbers<[1], [0], [0], [1], [0, 0, 1, 1], [], []>} : vector<16x32xbf16>, vector<32x32xbf16>, vector<16x32xf32> -> vector<16x32xf32>
    %c3 = arith.constant 3 : index
    %c0_16 = arith.constant 0 : index
    %35 = vector.load %arg4[%c3, %c0_16] : memref<8x32xf32, #tpu.memory_space<vmem>>, vector<1x32xf32>
    %36 = vector.broadcast %35 : vector<1x32xf32> to vector<16x32xf32>
    %37 = arith.addf %34, %36 : vector<16x32xf32>
    %c4 = arith.constant 4 : index
    %c0_17 = arith.constant 0 : index
    %38 = vector.load %arg4[%c4, %c0_17] : memref<8x32xf32, #tpu.memory_space<vmem>>, vector<1x32xf32>
    %c5 = arith.constant 5 : index
    %c0_18 = arith.constant 0 : index
    %39 = vector.load %arg4[%c5, %c0_18] : memref<8x32xf32, #tpu.memory_space<vmem>>, vector<1x32xf32>
    %cst_19 = arith.constant dense<0.000000e+00> : vector<16xf32>
    %40 = vector.multi_reduction <add>, %37, %cst_19 [1] : vector<16x32xf32> to vector<16xf32>
    %41 = vector.shape_cast %40 : vector<16xf32> to vector<16x1xf32>
    %42 = arith.mulf %37, %37 : vector<16x32xf32>
    %cst_20 = arith.constant dense<0.000000e+00> : vector<16xf32>
    %43 = vector.multi_reduction <add>, %42, %cst_20 [1] : vector<16x32xf32> to vector<16xf32>
    %44 = vector.shape_cast %43 : vector<16xf32> to vector<16x1xf32>
    %cst_21 = arith.constant 3.125000e-02 : f32
    %45 = vector.broadcast %cst_21 : f32 to vector<16x1xf32>
    %46 = arith.mulf %41, %45 : vector<16x1xf32>
    %cst_22 = arith.constant 3.125000e-02 : f32
    %47 = vector.broadcast %cst_22 : f32 to vector<16x1xf32>
    %48 = arith.mulf %44, %47 : vector<16x1xf32>
    %49 = arith.mulf %46, %46 : vector<16x1xf32>
    %50 = arith.subf %48, %49 : vector<16x1xf32>
    %51 = vector.broadcast %46 : vector<16x1xf32> to vector<16x32xf32>
    %52 = arith.subf %37, %51 : vector<16x32xf32>
    %cst_23 = arith.constant 9.99999974E-6 : f32
    %53 = vector.broadcast %cst_23 : f32 to vector<16x1xf32>
    %54 = arith.addf %50, %53 : vector<16x1xf32>
    %55 = math.rsqrt %54 : vector<16x1xf32>
    %56 = vector.broadcast %55 : vector<16x1xf32> to vector<16x32xf32>
    %57 = arith.mulf %52, %56 : vector<16x32xf32>
    %58 = vector.broadcast %38 : vector<1x32xf32> to vector<16x32xf32>
    %59 = arith.mulf %57, %58 : vector<16x32xf32>
    %60 = vector.broadcast %39 : vector<1x32xf32> to vector<16x32xf32>
    %61 = arith.addf %59, %60 : vector<16x32xf32>
    %cst_24 = arith.constant 0.000000e+00 : f32
    %62 = vector.broadcast %cst_24 : f32 to vector<16x32xf32>
    %63 = arith.maximumf %61, %62 : vector<16x32xf32>
    %c6 = arith.constant 6 : index
    %c0_25 = arith.constant 0 : index
    %64 = vector.load %arg4[%c6, %c0_25] : memref<8x32xf32, #tpu.memory_space<vmem>>, vector<1x32xf32>
    %65 = vector.broadcast %64 : vector<1x32xf32> to vector<16x32xf32>
    %66 = arith.mulf %63, %65 : vector<16x32xf32>
    %cst_26 = arith.constant dense<0.000000e+00> : vector<16xf32>
    %67 = vector.multi_reduction <add>, %66, %cst_26 [1] : vector<16x32xf32> to vector<16xf32>
    %68 = vector.shape_cast %67 : vector<16xf32> to vector<16x1xf32>
    %c7 = arith.constant 7 : index
    %c0_27 = arith.constant 0 : index
    %69 = vector.load %arg4[%c7, %c0_27] : memref<8x32xf32, #tpu.memory_space<vmem>>, vector<1x1xf32>
    %70 = vector.broadcast %69 : vector<1x1xf32> to vector<16x1xf32>
    %71 = arith.addf %68, %70 : vector<16x1xf32>
    %c0_28 = arith.constant 0 : index
    %c0_29 = arith.constant 0 : index
    %72 = vector.load %arg5[%c0_28, %c0_29] : memref<16x1xf32, #tpu.memory_space<vmem>>, vector<16x1xf32>
    tpu.vector_store %arg5[%c0_28, %c0_29], %71 {strides = array<i32>} : memref<16x1xf32, #tpu.memory_space<vmem>>, vector<16x1xf32>,
    return
  }
  func.func @transform_0(%arg0: i32) -> (i32, i32) {
    %c0_i32 = arith.constant 0 : i32
    %c0_i32_0 = arith.constant 0 : i32
    return %arg0, %c0_i32 : i32, i32
  }
  func.func @transform_1(%arg0: i32) -> (i32, i32) {
    %c0_i32 = arith.constant 0 : i32
    %c0_i32_0 = arith.constant 0 : i32
    %c0_i32_1 = arith.constant 0 : i32
    return %c0_i32, %c0_i32_0 : i32, i32
  }
  func.func @transform_2(%arg0: i32) -> (i32, i32) {
    %c0_i32 = arith.constant 0 : i32
    %c0_i32_0 = arith.constant 0 : i32
    %c0_i32_1 = arith.constant 0 : i32
    return %c0_i32, %c0_i32_0 : i32, i32
  }
  func.func @transform_3(%arg0: i32) -> (i32, i32) {
    %c0_i32 = arith.constant 0 : i32
    %c0_i32_0 = arith.constant 0 : i32
    %c0_i32_1 = arith.constant 0 : i32
    return %c0_i32, %c0_i32_0 : i32, i32
  }
  func.func @transform_4(%arg0: i32) -> (i32, i32) {
    %c0_i32 = arith.constant 0 : i32
    %c0_i32_0 = arith.constant 0 : i32
    return %arg0, %c0_i32 : i32, i32
  }
}

</mosaic_0001>

<llo_original>
// kernel: critic_forward.1
$region0: #{critic_forward.1}
  #allocation0 [shape = 'u32[]', space=smem, size = 0x4, offset = 0x4, fixed_abs, tag = 'smem constant byte address 0x4 - core index']
  #allocation1 [shape = 'u32[72,128]{1,0:T(1,128)}', space=vmem, size = 0x9000, scoped, tag = 'internal scratch']
  %s0 = inlined_call_operand.vmem [shape: bf16[16,32], index: 0, kind: input, shape index: {}]
  %s1 = inlined_call_operand.vmem [shape: bf16[32,32], index: 1, kind: input, shape index: {}]
  %s2 = inlined_call_operand.vmem [shape: bf16[32,32], index: 2, kind: input, shape index: {}]
  %s3 = inlined_call_operand.vmem [shape: f32[8,32], index: 3, kind: input, shape index: {}]
  %s4 = inlined_call_operand.vmem [shape: f32[16,1], index: 4, kind: output, shape index: {}]
  %s5 = sld [smem:[#allocation0]]
  $region26: #{critic_forward.1} parent=0
    _
  %s7 = ssub.s32 1, %s5
  %s8 = scalar_select 0, %s7, %s5
  // Predicated region
  $region2: #{critic_forward.1} parent=0 // pred_check
    _
  $region3: #{critic_forward.1} parent=0 // pred_check_branch
    %10 = sbr.rel (0) target = $region5
  $region4: #{critic_forward.1} parent=0 // pred_region
    _
  $region5: #{critic_forward.1} parent=0 // pred_fallthru
    _
  // Predicated region
  $region6: #{critic_forward.1} parent=0 // pred_check
    _
  $region7: #{critic_forward.1} parent=0 // pred_check_branch
    %12 = sbr.rel (0) target = $region9
  $region8: #{critic_forward.1} parent=0 // pred_region
    _
  $region9: #{critic_forward.1} parent=0 // pred_fallthru
    _
  // Predicated region
  $region10: #{critic_forward.1} parent=0 // pred_check
    _
  $region11: #{critic_forward.1} parent=0 // pred_check_branch
    %14 = sbr.rel (0) target = $region13
  $region12: #{critic_forward.1} parent=0 // pred_region
    _
  $region13: #{critic_forward.1} parent=0 // pred_fallthru
    _
  // Predicated region
  $region14: #{critic_forward.1} parent=0 // pred_check
    _
  $region15: #{critic_forward.1} parent=0 // pred_check_branch
    %16 = sbr.rel (0) target = $region17
  $region16: #{critic_forward.1} parent=0 // pred_region
    _
  $region17: #{critic_forward.1} parent=0 // pred_fallthru
    _
  %v18 = vld [vmem:[%s0] sm:$0xf]
  %v19 = vld [vmem:[%s0 + $0x4] sm:$0xf]
  %v20 = vld [vmem:[%s1] sm:$0xf]
  %v21 = vld [vmem:[%s1 + $0x4] sm:$0xf]
  %v22 = vld [vmem:[%s1 + $0x8] sm:$0xf]
  %v23 = vld [vmem:[%s1 + $0xc] sm:$0xf]
  %v24 = vld [vmem:[%s3] sm:$0x1]
  %v25 = vperm.slane %v24, 0
  %v28 = vunpack.c.l.b16 %v18
  %v29 = vunpack.c.l.b16 %v19
  %v30 = vpack.c.b16 %v29, %v28
  %v35 = vunpack.c.l.b16 %v20
  %v36 = vunpack.c.l.b16 %v21
  %v37 = vunpack.c.l.b16 %v22
  %v38 = vunpack.c.l.b16 %v23
  %v39 = vpack.c.b16 %v36, %v35
  %v40 = vpack.c.b16 %v38, %v37
  %vm43 = vcmask 261120
  %v45 = vsel %vm43, %v30, 0
  %47 = vmatpush.bf16.msra.mxu0 0
  %48 = vmatpush.bf16.msra.mxu0 0
  %49 = vmatpush.bf16.msra.mxu0 0
  %50 = vmatpush.bf16.msra.mxu0 0
  %51 = vmatpush.bf16.msra.mxu0 0
  %52 = vmatpush.bf16.msra.mxu0 0
  %53 = vmatpush.bf16.msra.mxu0 %v40
  %54 = vmatpush.bf16.msra.mxu0 %v39
  %55 = vmatmul.bf16.gmra.mxu0 %v45
  %v56 = vpop.f32.mrf.mxu0
  %v57 = vadd.f32 %v25, %v56
  %v58 = vpop.f32.mrf.mxu0
  %v59 = vadd.f32 %v25, %v58
  %60 = vdwg.mxu0
  %v61 = vld [vmem:[%s3 + $0x1] sm:$0x1]
  %v62 = vld [vmem:[%s3 + $0x2] sm:$0x1]
  %v63 = vsel %vm43, %v57, 0.0
  %64 = vadd.xlane.f32.xlu0 %v63
  %v65 = vpop.xlane.xlu0 %64
  %v66 = vsel %vm43, %v59, 0.0
  %67 = vadd.xlane.f32.xlu0 %v66
  %v68 = vpop.xlane.xlu0 %67
  %v69 = vmul.f32 %v57, %v57
  %v70 = vmul.f32 %v59, %v59
  %v71 = vsel %vm43, %v69, 0.0
  %72 = vadd.xlane.f32.xlu0 %v71
  %v73 = vpop.xlane.xlu0 %72
  %v74 = vsel %vm43, %v70, 0.0
  %75 = vadd.xlane.f32.xlu0 %v74
  %v76 = vpop.xlane.xlu0 %75
  %v77 = vmul.f32 %v65, 0.03125
  %v78 = vmul.f32 %v68, 0.03125
  %v79 = vmul.f32 %v73, 0.03125
  %v80 = vmul.f32 %v76, 0.03125
  %v81 = vmul.f32 %v77, %v77
  %v82 = vmul.f32 %v78, %v78
  %v83 = vsub.f32 %v79, %v81
  %v84 = vsub.f32 %v80, %v82
  %v85 = vsub.f32 %v57, %v77
  %v86 = vsub.f32 %v59, %v78
  %v87 = vadd.f32 %v83, 1e-05
  %v88 = vadd.f32 %v84, 1e-05
  %v89 = vrsqrt.pop %v87
  %v90 = vmul.f32 %v89, %v87
  %v91 = vmul.f32 %v90, %v89
  %v92 = vmul.f32 0.5, %v91
  %v93 = vsub.f32 1.5, %v92
  %v94 = vmul.f32 %v89, %v93
  %vm95 = vweird.f32 %v87
  %vm96 = vweird.f32 %v89
  %vm97 = vmor %vm95, %vm96
  %v98 = vsel %vm97, %v89, %v94
  %v99 = vrsqrt.pop %v88
  %v100 = vmul.f32 %v99, %v88
  %v101 = vmul.f32 %v100, %v99
  %v102 = vmul.f32 0.5, %v101
  %v103 = vsub.f32 1.5, %v102
  %v104 = vmul.f32 %v99, %v103
  %vm105 = vweird.f32 %v88
  %vm106 = vweird.f32 %v99
  %vm107 = vmor %vm105, %vm106
  %v108 = vsel %vm107, %v99, %v104
  %v109 = vmul.f32 %v85, %v98
  %v110 = vmul.f32 %v86, %v108
  %v111 = vperm.slane %v61, 0
  %v112 = vmul.f32 %v109, %v111
  %v113 = vmul.f32 %v110, %v111
  %v114 = vperm.slane %v62, 0
  %v115 = vadd.f32 %v112, %v114
  %v116 = vadd.f32 %v113, %v114
  %v117 = vmax.f32 %v115, 0.0
  %v118 = vmax.f32 %v116, 0.0
  %v119 = vpack.c.bf16 %v118, %v117
  %v120 = vld [vmem:[%s2] sm:$0xf]
  %v121 = vld [vmem:[%s2 + $0x4] sm:$0xf]
  %v122 = vld [vmem:[%s2 + $0x8] sm:$0xf]
  %v123 = vld [vmem:[%s2 + $0xc] sm:$0xf]
  %v124 = vld [vmem:[%s3 + $0x3] sm:$0x1]
  %v125 = vperm.slane %v124, 0
  %v130 = vunpack.c.l.b16 %v120
  %v131 = vunpack.c.l.b16 %v121
  %v132 = vunpack.c.l.b16 %v122
  %v133 = vunpack.c.l.b16 %v123
  %v134 = vpack.c.b16 %v131, %v130
  %v135 = vpack.c.b16 %v133, %v132
  %v139 = vsel %vm43, %v119, 0
  %141 = vmatpush.bf16.msra.mxu0 0
  %142 = vmatpush.bf16.msra.mxu0 0
  %143 = vmatpush.bf16.msra.mxu0 0
  %144 = vmatpush.bf16.msra.mxu0 0
  %145 = vmatpush.bf16.msra.mxu0 0
  %146 = vmatpush.bf16.msra.mxu0 0
  %147 = vmatpush.bf16.msra.mxu0 %v135
  %148 = vmatpush.bf16.msra.mxu0 %v134
  %149 = vmatmul.bf16.gmra.mxu0 %v139
  %v150 = vpop.f32.mrf.mxu0
  %v151 = vadd.f32 %v125, %v150
  %v152 = vpop.f32.mrf.mxu0
  %v153 = vadd.f32 %v125, %v152
  %154 = vdwg.mxu0
  %v155 = vld [vmem:[%s3 + $0x4] sm:$0x1]
  %v156 = vld [vmem:[%s3 + $0x5] sm:$0x1]
  %v157 = vsel %vm43, %v151, 0.0
  %158 = vadd.xlane.f32.xlu0 %v157
  %v159 = vpop.xlane.xlu0 %158
  %v160 = vsel %vm43, %v153, 0.0
  %161 = vadd.xlane.f32.xlu0 %v160
  %v162 = vpop.xlane.xlu0 %161
  %v163 = vmul.f32 %v151, %v151
  %v164 = vmul.f32 %v153, %v153
  %v165 = vsel %vm43, %v163, 0.0
  %166 = vadd.xlane.f32.xlu0 %v165
  %v167 = vpop.xlane.xlu0 %166
  %v168 = vsel %vm43, %v164, 0.0
  %169 = vadd.xlane.f32.xlu0 %v168
  %v170 = vpop.xlane.xlu0 %169
  %v171 = vmul.f32 %v159, 0.03125
  %v172 = vmul.f32 %v162, 0.03125
  %v173 = vmul.f32 %v167, 0.03125
  %v174 = vmul.f32 %v170, 0.03125
  %v175 = vmul.f32 %v171, %v171
  %v176 = vmul.f32 %v172, %v172
  %v177 = vsub.f32 %v173, %v175
  %v178 = vsub.f32 %v174, %v176
  %v179 = vsub.f32 %v151, %v171
  %v180 = vsub.f32 %v153, %v172
  %v181 = vadd.f32 %v177, 1e-05
  %v182 = vadd.f32 %v178, 1e-05
  %v183 = vrsqrt.pop %v181
  %v184 = vmul.f32 %v183, %v181
  %v185 = vmul.f32 %v184, %v183
  %v186 = vmul.f32 0.5, %v185
  %v187 = vsub.f32 1.5, %v186
  %v188 = vmul.f32 %v183, %v187
  %vm189 = vweird.f32 %v181
  %vm190 = vweird.f32 %v183
  %vm191 = vmor %vm189, %vm190
  %v192 = vsel %vm191, %v183, %v188
  %v193 = vrsqrt.pop %v182
  %v194 = vmul.f32 %v193, %v182
  %v195 = vmul.f32 %v194, %v193
  %v196 = vmul.f32 0.5, %v195
  %v197 = vsub.f32 1.5, %v196
  %v198 = vmul.f32 %v193, %v197
  %vm199 = vweird.f32 %v182
  %vm200 = vweird.f32 %v193
  %vm201 = vmor %vm199, %vm200
  %v202 = vsel %vm201, %v193, %v198
  %v203 = vmul.f32 %v179, %v192
  %v204 = vmul.f32 %v180, %v202
  %v205 = vperm.slane %v155, 0
  %v206 = vmul.f32 %v203, %v205
  %v207 = vmul.f32 %v204, %v205
  %v208 = vperm.slane %v156, 0
  %v209 = vadd.f32 %v206, %v208
  %v210 = vadd.f32 %v207, %v208
  %v211 = vmax.f32 %v209, 0.0
  %v212 = vmax.f32 %v210, 0.0
  %v213 = vld [vmem:[%s3 + $0x6] sm:$0x1]
  %v214 = vperm.slane %v213, 0
  %v215 = vmul.f32 %v211, %v214
  %v216 = vmul.f32 %v212, %v214
  %v217 = vsel %vm43, %v215, 0.0
  %218 = vadd.xlane.f32.xlu0 %v217
  %v219 = vpop.xlane.xlu0 %218
  %v220 = vsel %vm43, %v216, 0.0
  %221 = vadd.xlane.f32.xlu0 %v220
  %v222 = vpop.xlane.xlu0 %221
  %v223 = vld [vmem:[%s3 + $0x7] sm:$0x1]
  %v224 = vperm.slane %v223, 0
  %v225 = vadd.f32 %v219, %v224
  %v226 = vadd.f32 %v222, %v224
  %vm227 = vcmask 7168
  %228 = vst.msk [vmem:[%s4] sm:$0xff] %vm227, %v225
  %229 = vst.msk [vmem:[%s4 + $0x8] sm:$0xff] %vm227, %v226
  // Predicated region
  $region18: #{critic_forward.1} parent=0 // pred_check
    _
  $region19: #{critic_forward.1} parent=0 // pred_check_branch
    %231 = sbr.rel (0) target = $region21
  $region20: #{critic_forward.1} parent=0 // pred_region
    _
  $region21: #{critic_forward.1} parent=0 // pred_fallthru
    _
  // Predicated region
  $region22: #{critic_forward.1} parent=0 // pred_check
    _
  $region23: #{critic_forward.1} parent=0 // pred_check_branch
    %233 = sbr.rel (0) target = $region25
  $region24: #{critic_forward.1} parent=0 // pred_region
    _
  $region25: #{critic_forward.1} parent=0 // pred_fallthru
    _

</llo_original>
